<compile_context>
chip_gen: v6e
topology: v6e:2x2x1
jax: 0.10.0
libtpu: 0.0.40
codegen_flags: <defaults>
</compile_context>

<pallas_src>
from functools import partial

import jax
import jax.numpy as jnp
from jax.experimental import pallas as pl
from jax.experimental.pallas import tpu as pltpu


def _round_up(x: int, m: int) -> int:
    return ((x + m - 1) // m) * m


def _vmem_capacity_bytes() -> int:
    """Per-core VMEM capacity; conservative fallback if the query fails."""
    try:
        return int(pltpu.get_tpu_info().vmem_capacity_bytes)
    except Exception:
        return 64 * 1024 * 1024  # v7x per-TC size: safe lower bound everywhere


def _resident_spec(shape):
    """BlockSpec for an operand that never changes across the grid.

    Constant index_map + single buffer (Buffered(1)) => stays resident in VMEM
    at 1x its size instead of the default 2x.
    """
    try:
        return pl.BlockSpec(shape, lambda i: (0, 0), pipeline_mode=pl.Buffered(1))
    except TypeError:  # very old jax without pipeline_mode: fall back to default
        return pl.BlockSpec(shape, lambda i: (0, 0))


def mlp_kernel(x_ref, w1t_ref, b1_ref, w2t_ref, b2_ref, o_ref):
    # First linear: (TM, I) @ (I, H) + (1, H); f32 accumulation on the MXU.
    h = jnp.dot(x_ref[...], w1t_ref[...], preferred_element_type=jnp.float32)
    h = h + b1_ref[...].astype(jnp.float32)
    # Second linear, fused (no VMEM scratch round-trip). The cast is a no-op on
    # the f32 path, so strict PyTorch f32 semantics are preserved.
    y = jnp.dot(h.astype(w2t_ref.dtype), w2t_ref[...],
                preferred_element_type=jnp.float32)
    y = y + b2_ref[...].astype(jnp.float32)
    o_ref[...] = y.astype(o_ref.dtype)


def prepare_mlp_params(w1, b1, w2, b2, compute_dtype=None):
    """One-time pad + transpose of the Linear params.

    Call once and cache the result; do NOT call per forward step (that would
    re-materialize all weights in HBM on every call).
    w1: (H, I), b1: (H,), w2: (O, H), b2: (O,).
    Returns (w1t, b1p, w2t, b2p, out_features).
    """
    H, I = w1.shape
    O = w2.shape[0]
    I_p, H_p, O_p = _round_up(I, 128), _round_up(H, 128), _round_up(O, 128)
    wdt = compute_dtype if compute_dtype is not None else w1.dtype

    w1t = jnp.zeros((I_p, H_p), wdt).at[:I, :H].set(w1.T.astype(wdt))
    b1p = jnp.zeros((1, H_p), b1.dtype).at[0, :H].set(b1)
    w2t = jnp.zeros((H_p, O_p), wdt).at[:H, :O].set(w2.T.astype(wdt))
    b2p = jnp.zeros((1, O_p), b2.dtype).at[0, :O].set(b2)
    return w1t, b1p, w2t, b2p, O


@partial(jax.jit, static_argnames=("out_features", "block_m"))
def mlp_forward_padded(x, w1t, b1p, w2t, b2p, *, out_features, block_m=None):
    """Forward pass using pre-padded params from `prepare_mlp_params`.

    x: (B, I). Returns y = (x @ W1.T + b1) @ W2.T + b2 with shape (B, O).
    """
    B, I = x.shape
    I_p, H_p = w1t.shape
    O_p = w2t.shape[1]
    cdt = w1t.dtype
    out_dtype = x.dtype
    if x.dtype != cdt:
        x = x.astype(cdt)

    itemsize = jnp.dtype(cdt).itemsize
    sub = 8 if itemsize >= 4 else 16

    # --- Generation-aware defaults & batch tiling ---------------------------
    vmem_cap = _vmem_capacity_bytes()
    if block_m is None:
        block_m = 512 if vmem_cap >= 96 * 1024 * 1024 else 256

    # Balanced tiles: minimize last-tile padding for ragged B.
    n_tiles = max(1, -(-B // block_m))
    tm = _round_up(-(-B // n_tiles), sub)
    B_p = _round_up(B, tm)
    # v7x has 2 TensorCores; give the parallel axis >= 2 steps when possible
    # (near-free on single-core chips: only the x tile streams per step).
    if B_p // tm == 1 and B > sub:
        tm = _round_up(-(-B // 2), sub)
        B_p = _round_up(B, tm)
    grid = (B_p // tm,)

    # Per-call activation padding only (weights were prepped once, outside).
    xp = jnp.zeros((B_p, I_p), cdt).at[:B, :I].set(x)

    # --- VMEM budget from the actual buffer counts used below ---------------
    b_itm = jnp.dtype(b1p.dtype).itemsize
    o_itm = jnp.dtype(out_dtype).itemsize
    needed = (
        itemsize * (I_p * H_p + H_p * O_p)   # resident weights, x1 (Buffered(1))
        + b_itm * (H_p + O_p)                # resident biases,  x1
        + itemsize * 2 * tm * I_p            # streamed x tile,  x2 (double-buffered)
        + o_itm * 2 * tm * O_p               # streamed out tile, x2
        + 4 * tm * H_p                       # f32 intermediate (compiler-managed)
    )
    headroom = 8 * 1024 * 1024               # compiler-internal scratch headroom
    vmem_limit = min(vmem_cap - headroom,
                     max(32 * 1024 * 1024, needed + needed // 4))
    vmem_limit = max(int(vmem_limit), 16 * 1024 * 1024)

    flops = 2 * B_p * (I_p * H_p + H_p * O_p)
    bytes_accessed = (itemsize * (B_p * I_p + I_p * H_p + H_p * O_p)
                      + b_itm * (H_p + O_p) + o_itm * B_p * O_p)

    out_p = pl.pallas_call(
        mlp_kernel,
        out_shape=jax.ShapeDtypeStruct((B_p, O_p), out_dtype),
        grid=grid,
        in_specs=[
            pl.BlockSpec((tm, I_p), lambda i: (i, 0)),   # x tile streams
            _resident_spec((I_p, H_p)),                  # W1t resident, x1
            _resident_spec((1, H_p)),                    # b1  resident, x1
            _resident_spec((H_p, O_p)),                  # W2t resident, x1
            _resident_spec((1, O_p)),                    # b2  resident, x1
        ],
        out_specs=pl.BlockSpec((tm, O_p), lambda i: (i, 0)),
        compiler_params=pltpu.CompilerParams(
            dimension_semantics=(pltpu.PARALLEL,),
            vmem_limit_bytes=vmem_limit,
        ),
        cost_estimate=pl.CostEstimate(
            flops=flops, transcendentals=0, bytes_accessed=bytes_accessed),
    )(xp, w1t, b1p, w2t, b2p)

    return out_p[:B, :out_features]


def mlp_forward(x, w1, b1, w2, b2, compute_dtype=None):
    """Convenience one-shot wrapper. For repeated calls, call
    `prepare_mlp_params` once and reuse its outputs with `mlp_forward_padded`."""
    w1t, b1p, w2t, b2p, out_features = prepare_mlp_params(
        w1, b1, w2, b2, compute_dtype=compute_dtype)
    return mlp_forward_padded(x, w1t, b1p, w2t, b2p, out_features=out_features)


def init_linear_params(key, in_features, out_features, dtype=jnp.float32):
    # Deterministic init mimicking torch.nn.Linear's uniform(-1/sqrt(fan_in), +)
    k_w, k_b = jax.random.split(key)
    bound = 1.0 / (in_features ** 0.5)
    w = jax.random.uniform(k_w, (out_features, in_features), dtype,
                           minval=-bound, maxval=bound)
    b = jax.random.uniform(k_b, (out_features,), dtype,
                           minval=-bound, maxval=bound)
    return w, b


if __name__ == "__main__":
    # Small shapes consistent with the module: batch=2, input=16, hidden=32, out=8
    batch, input_size, hidden_size, output_size = 2, 16, 32, 8

    key = jax.random.PRNGKey(0)
    k_x, k_l1, k_l2 = jax.random.split(key, 3)

    x = jax.random.normal(k_x, (batch, input_size), jnp.float32)
    w1, b1 = init_linear_params(k_l1, input_size, hidden_size)
    w2, b2 = init_linear_params(k_l2, hidden_size, output_size)

    # One-time weight prep (pad + transpose), cached and reused across calls.
    w1t, b1p, w2t, b2p, out_features = prepare_mlp_params(w1, b1, w2, b2)

    out = mlp_forward_padded(x, w1t, b1p, w2t, b2p, out_features=out_features)
    out = jax.block_until_ready(out)

    # Pure-JAX reference check of the PyTorch forward semantics.
    ref = (x @ w1.T + b1) @ w2.T + b2
    assert out.shape == (batch, output_size)
    assert out.dtype == x.dtype
    assert jnp.allclose(out, ref, atol=1e-5, rtol=1e-5)

    print("KERNEL_OK")
</pallas_src>

<mosaic_0001>
module attributes {stable_mosaic.version = 11 : i64} {
  func.func @mlp_kernel(%arg0: i32, %arg1: memref<8x128xf32, #tpu.memory_space<vmem>>, %arg2: memref<128x128xf32, #tpu.memory_space<vmem>>, %arg3: memref<1x128xf32, #tpu.memory_space<vmem>>, %arg4: memref<128x128xf32, #tpu.memory_space<vmem>>, %arg5: memref<1x128xf32, #tpu.memory_space<vmem>>, %arg6: memref<8x128xf32, #tpu.memory_space<vmem>>) attributes {dimension_semantics = [#tpu.dimension_semantics<parallel>], iteration_bounds = array<i64: 1>, scalar_prefetch = 0 : i64, scratch_operands = 0 : i64, tpu.core_type = #tpu.core_type<tc>, window_params = [{transform_indices = @transform_0, window_bounds = array<i64: 8, 128>}, {pipeline_mode = #tpu.pipeline_mode<synchronous>, transform_indices = @transform_1, window_bounds = array<i64: 128, 128>}, {pipeline_mode = #tpu.pipeline_mode<synchronous>, transform_indices = @transform_2, window_bounds = array<i64: 1, 128>}, {pipeline_mode = #tpu.pipeline_mode<synchronous>, transform_indices = @transform_3, window_bounds = array<i64: 128, 128>}, {pipeline_mode = #tpu.pipeline_mode<synchronous>, transform_indices = @transform_4, window_bounds = array<i64: 1, 128>}, {transform_indices = @transform_5, window_bounds = array<i64: 8, 128>}]} {
    %c0 = arith.constant 0 : index
    %c0_0 = arith.constant 0 : index
    %0 = vector.load %arg1[%c0, %c0_0] : memref<8x128xf32, #tpu.memory_space<vmem>>, vector<8x128xf32>
    %c0_1 = arith.constant 0 : index
    %c0_2 = arith.constant 0 : index
    %1 = vector.load %arg2[%c0_1, %c0_2] : memref<128x128xf32, #tpu.memory_space<vmem>>, vector<128x128xf32>
    %cst = arith.constant dense<0.000000e+00> : vector<8x128xf32>
    %2 = tpu.matmul %0, %1, %cst {dimension_numbers = #tpu.dot_dimension_numbers<[1], [0], [0], [1], [0, 0, 1, 1], [], []>} : vector<8x128xf32>, vector<128x128xf32>, vector<8x128xf32> -> vector<8x128xf32>
    %c0_3 = arith.constant 0 : index
    %c0_4 = arith.constant 0 : index
    %3 = vector.load %arg3[%c0_3, %c0_4] : memref<1x128xf32, #tpu.memory_space<vmem>>, vector<1x128xf32>
    %4 = vector.broadcast %3 : vector<1x128xf32> to vector<8x128xf32>
    %5 = arith.addf %2, %4 : vector<8x128xf32>
    %c0_5 = arith.constant 0 : index
    %c0_6 = arith.constant 0 : index
    %6 = vector.load %arg4[%c0_5, %c0_6] : memref<128x128xf32, #tpu.memory_space<vmem>>, vector<128x128xf32>
    %cst_7 = arith.constant dense<0.000000e+00> : vector<8x128xf32>
    %7 = tpu.matmul %5, %6, %cst_7 {dimension_numbers = #tpu.dot_dimension_numbers<[1], [0], [0], [1], [0, 0, 1, 1], [], []>} : vector<8x128xf32>, vector<128x128xf32>, vector<8x128xf32> -> vector<8x128xf32>
    %c0_8 = arith.constant 0 : index
    %c0_9 = arith.constant 0 : index
    %8 = vector.load %arg5[%c0_8, %c0_9] : memref<1x128xf32, #tpu.memory_space<vmem>>, vector<1x128xf32>
    %9 = vector.broadcast %8 : vector<1x128xf32> to vector<8x128xf32>
    %10 = arith.addf %7, %9 : vector<8x128xf32>
    %c0_10 = arith.constant 0 : index
    %c0_11 = arith.constant 0 : index
    %11 = vector.load %arg6[%c0_10, %c0_11] : memref<8x128xf32, #tpu.memory_space<vmem>>, vector<8x128xf32>
    tpu.vector_store %arg6[%c0_10, %c0_11], %10 {strides = array<i32>} : memref<8x128xf32, #tpu.memory_space<vmem>>, vector<8x128xf32>,
    return
  }
  func.func @transform_0(%arg0: i32) -> (i32, i32) {
    %c0_i32 = arith.constant 0 : i32
    %c0_i32_0 = arith.constant 0 : i32
    return %arg0, %c0_i32 : i32, i32
  }
  func.func @transform_1(%arg0: i32) -> (i32, i32) {
    %c0_i32 = arith.constant 0 : i32
    %c0_i32_0 = arith.constant 0 : i32
    %c0_i32_1 = arith.constant 0 : i32
    return %c0_i32, %c0_i32_0 : i32, i32
  }
  func.func @transform_2(%arg0: i32) -> (i32, i32) {
    %c0_i32 = arith.constant 0 : i32
    %c0_i32_0 = arith.constant 0 : i32
    %c0_i32_1 = arith.constant 0 : i32
    return %c0_i32, %c0_i32_0 : i32, i32
  }
  func.func @transform_3(%arg0: i32) -> (i32, i32) {
    %c0_i32 = arith.constant 0 : i32
    %c0_i32_0 = arith.constant 0 : i32
    %c0_i32_1 = arith.constant 0 : i32
    return %c0_i32, %c0_i32_0 : i32, i32
  }
  func.func @transform_4(%arg0: i32) -> (i32, i32) {
    %c0_i32 = arith.constant 0 : i32
    %c0_i32_0 = arith.constant 0 : i32
    %c0_i32_1 = arith.constant 0 : i32
    return %c0_i32, %c0_i32_0 : i32, i32
  }
  func.func @transform_5(%arg0: i32) -> (i32, i32) {
    %c0_i32 = arith.constant 0 : i32
    %c0_i32_0 = arith.constant 0 : i32
    return %arg0, %c0_i32 : i32, i32
  }
}

</mosaic_0001>

<llo_original>
// kernel: mlp_forward_padded.1
$region0: #{mlp_forward_padded.1}
  #allocation0 [shape = 'u32[]', space=smem, size = 0x4, offset = 0x4, fixed_abs, tag = 'smem constant byte address 0x4 - core index']
  #allocation1 [shape = 'u32[144,128]{1,0:T(1,128)}', space=vmem, size = 0x12000, scoped, tag = 'internal scratch']
  %s0 = inlined_call_operand.vmem [shape: f32[8,128], index: 0, kind: input, shape index: {}]
  %s1 = inlined_call_operand.hbm [shape: f32[128,128], index: 1, kind: input, shape index: {}]
  %s2 = inlined_call_operand.vmem [shape: f32[1,128], index: 2, kind: input, shape index: {}]
  %s3 = inlined_call_operand.hbm [shape: f32[128,128], index: 3, kind: input, shape index: {}]
  %s4 = inlined_call_operand.vmem [shape: f32[1,128], index: 4, kind: input, shape index: {}]
  %s5 = inlined_call_operand.vmem [shape: f32[8,128], index: 5, kind: output, shape index: {}]
  %s6 = sld [smem:[#allocation0]]
  $region38: #{mlp_forward_padded.1} parent=0
    _
  %s8 = ssub.s32 1, %s6
  %s9 = scalar_select 0, %s8, %s6
  $region1: #{mlp_forward_padded.1} parent=0
    #allocation2 [shape = 'u8[65536]{0}', space=vmem, size = 0x10000, scoped, tag = 'input window, operand 1, single buffered']
    #allocation3 [shape = 's32[1]{0}', space=sflag, size = 0x4, scoped, tag = 'scoped memory for mlp_forward_padded.1']
    #allocation4 [shape = 'u8[65536]{0}', space=vmem, size = 0x10000, scoped, tag = 'input window, operand 3, single buffered']
    #allocation5 [shape = 's32[1]{0}', space=sflag, size = 0x4, scoped, tag = 'scoped memory for mlp_forward_padded.1']
    %10 = vsyncpa [#allocation3], 0
    %11 = vsyncpa [#allocation5], 0
    // Predicated region
    $region2: #{mlp_forward_padded.1} parent=1 // pred_check
      _
    $region3: #{mlp_forward_padded.1} parent=1 // pred_check_branch
      %13 = sbr.rel (0) target = $region5
    $region4: #{mlp_forward_padded.1} parent=1 // pred_region
      _
    $region5: #{mlp_forward_padded.1} parent=1 // pred_fallthru
      _
    // Predicated region
    $region6: #{mlp_forward_padded.1} parent=1 // pred_check
      _
    $region7: #{mlp_forward_padded.1} parent=1 // pred_check_branch
      %15 = sbr.rel (0) target = $region9
    $region8: #{mlp_forward_padded.1} parent=1 // pred_region
      %s17 = ssub.s32 2048, 2048
      %18 = vsyncadd [#allocation3], %s17
      %s19 = sshll.u32 [#allocation2], 4
      %s20 = int_to_ptr.vmem [resolvable:$true] %s19
      %25 = dma.hbm_to_vmem [thread:$0]  %s1, 2048, %s20, [#allocation3], 128, 128, 8
    $region9: #{mlp_forward_padded.1} parent=1 // pred_fallthru
      _
    // Predicated region
    $region10: #{mlp_forward_padded.1} parent=1 // pred_check
      _
    $region11: #{mlp_forward_padded.1} parent=1 // pred_check_branch
      %27 = sbr.rel (0) target = $region13
    $region12: #{mlp_forward_padded.1} parent=1 // pred_region
      _
    $region13: #{mlp_forward_padded.1} parent=1 // pred_fallthru
      _
    // Predicated region
    $region14: #{mlp_forward_padded.1} parent=1 // pred_check
      _
    $region15: #{mlp_forward_padded.1} parent=1 // pred_check_branch
      %29 = sbr.rel (0) target = $region17
    $region16: #{mlp_forward_padded.1} parent=1 // pred_region
      %s31 = ssub.s32 2048, 2048
      %32 = vsyncadd [#allocation5], %s31
      %s33 = sshll.u32 [#allocation4], 4
      %s34 = int_to_ptr.vmem [resolvable:$true] %s33
      %39 = dma.hbm_to_vmem [thread:$0]  %s3, 2048, %s34, [#allocation5], 128, 128, 8
    $region17: #{mlp_forward_padded.1} parent=1 // pred_fallthru
      _
    // Predicated region
    $region18: #{mlp_forward_padded.1} parent=1 // pred_check
      _
    $region19: #{mlp_forward_padded.1} parent=1 // pred_check_branch
      %41 = sbr.rel (0) target = $region21
    $region20: #{mlp_forward_padded.1} parent=1 // pred_region
      _
    $region21: #{mlp_forward_padded.1} parent=1 // pred_fallthru
      _
    // Predicated region
    $region22: #{mlp_forward_padded.1} parent=1 // pred_check
      _
    $region23: #{mlp_forward_padded.1} parent=1 // pred_check_branch
      %43 = sbr.rel (0) target = $region25
    $region24: #{mlp_forward_padded.1} parent=1 // pred_region
      %44 = dma.done [#allocation3], 2048
    $region25: #{mlp_forward_padded.1} parent=1 // pred_fallthru
      _
    // Predicated region
    $region26: #{mlp_forward_padded.1} parent=1 // pred_check
      _
    $region27: #{mlp_forward_padded.1} parent=1 // pred_check_branch
      %46 = sbr.rel (0) target = $region29
    $region28: #{mlp_forward_padded.1} parent=1 // pred_region
      %47 = dma.done [#allocation5], 2048
    $region29: #{mlp_forward_padded.1} parent=1 // pred_fallthru
      _
    %v48 = vld [vmem:[%s0] sm:$0xff]
    %v49 = vld [vmem:[#allocation2] sm:$0xff]
    %v50 = vld [vmem:[#allocation2 + $0x8] sm:$0xff]
    %v51 = vld [vmem:[#allocation2 + $0x10] sm:$0xff]
    %v52 = vld [vmem:[#allocation2 + $0x18] sm:$0xff]
    %v53 = vld [vmem:[#allocation2 + $0x20] sm:$0xff]
    %v54 = vld [vmem:[#allocation2 + $0x28] sm:$0xff]
    %v55 = vld [vmem:[#allocation2 + $0x30] sm:$0xff]
    %v56 = vld [vmem:[#allocation2 + $0x38] sm:$0xff]
    %v57 = vld [vmem:[#allocation2 + $0x40] sm:$0xff]
    %v58 = vld [vmem:[#allocation2 + $0x48] sm:$0xff]
    %v59 = vld [vmem:[#allocation2 + $0x50] sm:$0xff]
    %v60 = vld [vmem:[#allocation2 + $0x58] sm:$0xff]
    %v61 = vld [vmem:[#allocation2 + $0x60] sm:$0xff]
    %v62 = vld [vmem:[#allocation2 + $0x68] sm:$0xff]
    %v63 = vld [vmem:[#allocation2 + $0x70] sm:$0xff]
    %v64 = vld [vmem:[#allocation2 + $0x78] sm:$0xff]
    %v65 = vld [vmem:[%s2] sm:$0x1]
    %v67 = vlaneseq
    %v68 = vshrl.u32 %v67, 7
    %v69 = vsub.s32 0, %v68
    %v70 = vrot.slane %v65, %v69
    %72 = vmatprep.subr.mxu0 0.0
    %73 = vmatpush1.msra.mxu0 %v64
    %74 = vmatprep.subr.mxu0 0.0
    %75 = vmatpush1.msra.mxu0 %v63
    %76 = vmatprep.subr.mxu0 0.0
    %77 = vmatpush1.msra.mxu0 %v62
    %78 = vmatprep.subr.mxu0 0.0
    %79 = vmatpush1.msra.mxu0 %v61
    %80 = vmatprep.subr.mxu0 0.0
    %81 = vmatpush1.msra.mxu0 %v60
    %82 = vmatprep.subr.mxu0 0.0
    %83 = vmatpush1.msra.mxu0 %v59
    %84 = vmatprep.subr.mxu0 0.0
    %85 = vmatpush1.msra.mxu0 %v58
    %86 = vmatprep.subr.mxu0 0.0
    %87 = vmatpush1.msra.mxu0 %v57
    %88 = vmatprep.subr.mxu0 0.0
    %89 = vmatpush1.msra.mxu0 %v56
    %90 = vmatprep.subr.mxu0 0.0
    %91 = vmatpush1.msra.mxu0 %v55
    %92 = vmatprep.subr.mxu0 0.0
    %93 = vmatpush1.msra.mxu0 %v54
    %94 = vmatprep.subr.mxu0 0.0
    %95 = vmatpush1.msra.mxu0 %v53
    %96 = vmatprep.subr.mxu0 0.0
    %97 = vmatpush1.msra.mxu0 %v52
    %98 = vmatprep.subr.mxu0 0.0
    %99 = vmatpush1.msra.mxu0 %v51
    %100 = vmatprep.subr.mxu0 0.0
    %101 = vmatpush1.msra.mxu0 %v50
    %102 = vmatprep.subr.mxu0 0.0
    %103 = vmatpush1.msra.mxu0 %v49
    %104 = vmatprep.subr.mxu0 0.0
    %105 = vmatpush2.msra.mxu0 0.0
    %106 = vmatprep.subr.mxu0 0.0
    %107 = vmatpush2.msra.mxu0 0.0
    %108 = vmatprep.subr.mxu0 0.0
    %109 = vmatpush2.msra.mxu0 0.0
    %110 = vmatprep.subr.mxu0 0.0
    %111 = vmatpush2.msra.mxu0 0.0
    %112 = vmatprep.subr.mxu0 0.0
    %113 = vmatpush2.msra.mxu0 0.0
    %114 = vmatprep.subr.mxu0 0.0
    %115 = vmatpush2.msra.mxu0 0.0
    %116 = vmatprep.subr.mxu0 0.0
    %117 = vmatpush2.msra.mxu0 0.0
    %118 = vmatprep.subr.mxu0 0.0
    %119 = vmatpush2.msra.mxu0 0.0
    %120 = vmatprep.subr.mxu0 0.0
    %121 = vmatpush2.msra.mxu0 0.0
    %122 = vmatprep.subr.mxu0 0.0
    %123 = vmatpush2.msra.mxu0 0.0
    %124 = vmatprep.subr.mxu0 0.0
    %125 = vmatpush2.msra.mxu0 0.0
    %126 = vmatprep.subr.mxu0 0.0
    %127 = vmatpush2.msra.mxu0 0.0
    %128 = vmatprep.subr.mxu0 0.0
    %129 = vmatpush2.msra.mxu0 0.0
    %130 = vmatprep.subr.mxu0 0.0
    %131 = vmatpush2.msra.mxu0 0.0
    %132 = vmatprep.subr.mxu0 0.0
    %133 = vmatpush2.msra.mxu0 0.0
    %134 = vmatprep.subr.mxu0 0.0
    %135 = vmatpush2.msra.mxu0 0.0
    %136 = vmatprep.mubr.f32.mxu0 0.0
    %137 = vmatmul.mubr.f32.gmra.mxu0 %v48
    %v138 = vpop.f32.mrf.mxu0
    %v139 = vadd.f32 %v70, %v138
    %v140 = vpop.f32.mrf.mxu0
    %141 = vdwg.mxu0
    %v142 = vld [vmem:[#allocation4] sm:$0xff]
    %v143 = vld [vmem:[#allocation4 + $0x8] sm:$0xff]
    %v144 = vld [vmem:[#allocation4 + $0x10] sm:$0xff]
    %v145 = vld [vmem:[#allocation4 + $0x18] sm:$0xff]
    %v146 = vld [vmem:[#allocation4 + $0x20] sm:$0xff]
    %v147 = vld [vmem:[#allocation4 + $0x28] sm:$0xff]
    %v148 = vld [vmem:[#allocation4 + $0x30] sm:$0xff]
    %v149 = vld [vmem:[#allocation4 + $0x38] sm:$0xff]
    %v150 = vld [vmem:[#allocation4 + $0x40] sm:$0xff]
    %v151 = vld [vmem:[#allocation4 + $0x48] sm:$0xff]
    %v152 = vld [vmem:[#allocation4 + $0x50] sm:$0xff]
    %v153 = vld [vmem:[#allocation4 + $0x58] sm:$0xff]
    %v154 = vld [vmem:[#allocation4 + $0x60] sm:$0xff]
    %v155 = vld [vmem:[#allocation4 + $0x68] sm:$0xff]
    %v156 = vld [vmem:[#allocation4 + $0x70] sm:$0xff]
    %v157 = vld [vmem:[#allocation4 + $0x78] sm:$0xff]
    %v158 = vld [vmem:[%s4] sm:$0x1]
    %v160 = vlaneseq
    %v161 = vshrl.u32 %v160, 7
    %v162 = vsub.s32 0, %v161
    %v163 = vrot.slane %v158, %v162
    %165 = vmatprep.subr.mxu0 0.0
    %166 = vmatpush1.msra.mxu0 %v157
    %167 = vmatprep.subr.mxu0 0.0
    %168 = vmatpush1.msra.mxu0 %v156
    %169 = vmatprep.subr.mxu0 0.0
    %170 = vmatpush1.msra.mxu0 %v155
    %171 = vmatprep.subr.mxu0 0.0
    %172 = vmatpush1.msra.mxu0 %v154
    %173 = vmatprep.subr.mxu0 0.0
    %174 = vmatpush1.msra.mxu0 %v153
    %175 = vmatprep.subr.mxu0 0.0
    %176 = vmatpush1.msra.mxu0 %v152
    %177 = vmatprep.subr.mxu0 0.0
    %178 = vmatpush1.msra.mxu0 %v151
    %179 = vmatprep.subr.mxu0 0.0
    %180 = vmatpush1.msra.mxu0 %v150
    %181 = vmatprep.subr.mxu0 0.0
    %182 = vmatpush1.msra.mxu0 %v149
    %183 = vmatprep.subr.mxu0 0.0
    %184 = vmatpush1.msra.mxu0 %v148
    %185 = vmatprep.subr.mxu0 0.0
    %186 = vmatpush1.msra.mxu0 %v147
    %187 = vmatprep.subr.mxu0 0.0
    %188 = vmatpush1.msra.mxu0 %v146
    %189 = vmatprep.subr.mxu0 0.0
    %190 = vmatpush1.msra.mxu0 %v145
    %191 = vmatprep.subr.mxu0 0.0
    %192 = vmatpush1.msra.mxu0 %v144
    %193 = vmatprep.subr.mxu0 0.0
    %194 = vmatpush1.msra.mxu0 %v143
    %195 = vmatprep.subr.mxu0 0.0
    %196 = vmatpush1.msra.mxu0 %v142
    %197 = vmatprep.subr.mxu0 0.0
    %198 = vmatpush2.msra.mxu0 0.0
    %199 = vmatprep.subr.mxu0 0.0
    %200 = vmatpush2.msra.mxu0 0.0
    %201 = vmatprep.subr.mxu0 0.0
    %202 = vmatpush2.msra.mxu0 0.0
    %203 = vmatprep.subr.mxu0 0.0
    %204 = vmatpush2.msra.mxu0 0.0
    %205 = vmatprep.subr.mxu0 0.0
    %206 = vmatpush2.msra.mxu0 0.0
    %207 = vmatprep.subr.mxu0 0.0
    %208 = vmatpush2.msra.mxu0 0.0
    %209 = vmatprep.subr.mxu0 0.0
    %210 = vmatpush2.msra.mxu0 0.0
    %211 = vmatprep.subr.mxu0 0.0
    %212 = vmatpush2.msra.mxu0 0.0
    %213 = vmatprep.subr.mxu0 0.0
    %214 = vmatpush2.msra.mxu0 0.0
    %215 = vmatprep.subr.mxu0 0.0
    %216 = vmatpush2.msra.mxu0 0.0
    %217 = vmatprep.subr.mxu0 0.0
    %218 = vmatpush2.msra.mxu0 0.0
    %219 = vmatprep.subr.mxu0 0.0
    %220 = vmatpush2.msra.mxu0 0.0
    %221 = vmatprep.subr.mxu0 0.0
    %222 = vmatpush2.msra.mxu0 0.0
    %223 = vmatprep.subr.mxu0 0.0
    %224 = vmatpush2.msra.mxu0 0.0
    %225 = vmatprep.subr.mxu0 0.0
    %226 = vmatpush2.msra.mxu0 0.0
    %227 = vmatprep.subr.mxu0 0.0
    %228 = vmatpush2.msra.mxu0 0.0
    %229 = vmatprep.mubr.f32.mxu0 0.0
    %230 = vmatmul.mubr.f32.gmra.mxu0 %v139
    %v231 = vpop.f32.mrf.mxu0
    %v232 = vadd.f32 %v163, %v231
    %v233 = vpop.f32.mrf.mxu0
    %234 = vdwg.mxu0
    %235 = vst [vmem:[%s5] sm:$0xff] %v232
    // Predicated region
    $region30: #{mlp_forward_padded.1} parent=1 // pred_check
      _
    $region31: #{mlp_forward_padded.1} parent=1 // pred_check_branch
      %237 = sbr.rel (0) target = $region33
    $region32: #{mlp_forward_padded.1} parent=1 // pred_region
      _
    $region33: #{mlp_forward_padded.1} parent=1 // pred_fallthru
      _
    // Predicated region
    $region34: #{mlp_forward_padded.1} parent=1 // pred_check
      _
    $region35: #{mlp_forward_padded.1} parent=1 // pred_check_branch
      %239 = sbr.rel (0) target = $region37
    $region36: #{mlp_forward_padded.1} parent=1 // pred_region
      _
    $region37: #{mlp_forward_padded.1} parent=1 // pred_fallthru
      _
    %240 = vsyncpa [#allocation3], 1
    %241 = vsyncpa [#allocation5], 1

</llo_original>
